<compile_context>
chip_gen: v7x
topology: tpu7x:2x2x1
jax: 0.10.0
libtpu: 0.0.40
codegen_flags: <defaults>
</compile_context>

<pallas_src>
import functools

import jax
import jax.numpy as jnp
from jax.experimental import pallas as pl
from jax.experimental.pallas import tpu as pltpu

PAD = 128  # lane-padded hidden width (32, 16, 1 all fit in 128 lanes)


def _mlp_kernel(s_ref, a_ref, w1_ref, w_ref, b_ref, o_ref):
    # s_ref: (tm, Ss)      a_ref: (tm, Sa)
    # w1_ref: (Ss+Sa, 128) first-layer weight, zero-padded on lanes >= 32
    # w_ref:  (2, 128, 128) layer-2 / head weights, zero-padded
    # b_ref:  (3, 1, 128)   biases, zero-padded
    # o_ref:  (tm, 1)       lane-narrow output (only lane 0 is meaningful)
    tm = s_ref.shape[0]
    ss = s_ref.shape[1]
    asz = a_ref.shape[1]

    s = s_ref[...].astype(jnp.float32)
    a = a_ref[...].astype(jnp.float32)

    # ---- Layer 1 (fused concat + pad): K = ss + asz is tiny, so build the
    # 128-lane hidden row with an unrolled rank-1 accumulation on the VPU.
    # Lanes >= 32 stay exactly 0 because w1/b1 are zero-padded there.
    h = jnp.zeros((tm, PAD), jnp.float32) + b_ref[0]
    for k in range(ss):
        h = h + s[:, k:k + 1] * w1_ref[k:k + 1, :]
    for k in range(asz):
        h = h + a[:, k:k + 1] * w1_ref[ss + k:ss + k + 1, :]
    h = jnp.maximum(h, 0.0)

    # ---- Layers 2 and 3: native (tm,128)x(128,128) MXU matmuls.
    h = jnp.maximum(
        jnp.dot(h, w_ref[0], preferred_element_type=jnp.float32) + b_ref[1], 0.0)
    y = jnp.dot(h, w_ref[1], preferred_element_type=jnp.float32) + b_ref[2]

    # Only lane 0 carries the scalar prediction.
    o_ref[...] = y[:, :1]


def prepare_params(params):
    """One-time prep (outside the per-call path): zero-pad the three Linear
    layers.  Weights are stored (in_features, out_features)."""
    (w1, b1), (w2, b2), (w3, b3) = params
    sm = w1.shape[0]

    w1p = jnp.zeros((sm, PAD), jnp.float32).at[:, : w1.shape[1]].set(
        w1.astype(jnp.float32))

    W = jnp.zeros((2, PAD, PAD), jnp.float32)
    W = W.at[0, : w2.shape[0], : w2.shape[1]].set(w2.astype(jnp.float32))
    W = W.at[1, : w3.shape[0], : w3.shape[1]].set(w3.astype(jnp.float32))

    B = jnp.zeros((3, 1, PAD), jnp.float32)
    B = B.at[0, 0, : b1.shape[0]].set(b1.astype(jnp.float32))
    B = B.at[1, 0, : b2.shape[0]].set(b2.astype(jnp.float32))
    B = B.at[2, 0, : b3.shape[0]].set(b3.astype(jnp.float32))
    return (w1p, W, B)


def _round_up(n, m):
    return ((n + m - 1) // m) * m


def meta_predictor_forward_batched(states, actions, prepped, *, tm=2048):
    """states: (B, state_size), actions: (B, action_size) -> (B, 1)."""
    w1p, W, B = prepped
    bsz, ss = states.shape
    asz = actions.shape[1]
    sm = ss + asz

    # Row tile: multiple of 8, large (amortize ~0.35us per-step overhead),
    # capped so the grid has >= 2 steps when there are >= 16 rows (keeps both
    # v7x TensorCores busy under dimension_semantics=("parallel",)).
    tm_eff = min(tm, _round_up(bsz, 8))
    if bsz >= 16:
        tm_eff = min(tm_eff, max(8, (bsz // 2) // 8 * 8))
    tm_eff = max(8, (tm_eff // 8) * 8)
    grid = (pl.cdiv(bsz, tm_eff),)  # ragged last tile handled by Pallas

    out = pl.pallas_call(
        _mlp_kernel,
        out_shape=jax.ShapeDtypeStruct((bsz, 1), jnp.float32),
        grid=grid,
        in_specs=[
            pl.BlockSpec((tm_eff, ss), lambda i: (i, 0)),
            pl.BlockSpec((tm_eff, asz), lambda i: (i, 0)),
            pl.BlockSpec((sm, PAD), lambda i: (0, 0)),
            pl.BlockSpec((2, PAD, PAD), lambda i: (0, 0, 0)),
            pl.BlockSpec((3, 1, PAD), lambda i: (0, 0, 0)),
        ],
        out_specs=pl.BlockSpec((tm_eff, 1), lambda i: (i, 0)),
        compiler_params=pltpu.CompilerParams(
            dimension_semantics=("parallel",)),
    )(states.astype(jnp.float32), actions.astype(jnp.float32), w1p, W, B)
    return out


def meta_predictor_forward(state, action, prepped):
    """state: (state_size,), action: (action_size,) -> (1,) (matches PyTorch)."""
    out = meta_predictor_forward_batched(state[None, :], action[None, :], prepped)
    return out[0]


def init_params(key, state_size, action_size):
    """Mirrors the PyTorch module's init: fanin_init (uniform +/-1/sqrt(fan_in))
    for linear1/linear2 weights, uniform +/-3e-3 for the head weight, and the
    default nn.Linear bias init (+/-1/sqrt(fan_in)) for all biases."""
    sm = state_size + action_size
    sizes = [sm, 32, 16, 1]
    keys = jax.random.split(key, 6)

    def uni(k, shape, bound):
        return jax.random.uniform(k, shape, jnp.float32, minval=-bound, maxval=bound)

    # weights stored (in_features, out_features)
    w1 = uni(keys[0], (sizes[0], sizes[1]), 1.0 / jnp.sqrt(sizes[0]))
    b1 = uni(keys[1], (sizes[1],), 1.0 / jnp.sqrt(sizes[0]))
    w2 = uni(keys[2], (sizes[1], sizes[2]), 1.0 / jnp.sqrt(sizes[1]))
    b2 = uni(keys[3], (sizes[2],), 1.0 / jnp.sqrt(sizes[1]))
    w3 = uni(keys[4], (sizes[2], sizes[3]), 3.0 * 0.001)
    b3 = uni(keys[5], (sizes[3],), 1.0 / jnp.sqrt(sizes[2]))
    return ((w1, b1), (w2, b2), (w3, b3))


def reference_forward(state, action, params):
    (w1, b1), (w2, b2), (w3, b3) = params
    x = jnp.concatenate([state, action], axis=0)
    x = jnp.maximum(x @ w1 + b1, 0.0)
    x = jnp.maximum(x @ w2 + b2, 0.0)
    return x @ w3 + b3


if __name__ == "__main__":
    state_size, action_size = 8, 4
    key = jax.random.PRNGKey(0)
    k_s, k_a, k_p, k_bs, k_ba = jax.random.split(key, 5)

    params = init_params(k_p, state_size, action_size)
    prepped = prepare_params(params)  # one-time pad/pack, not in per-call path

    # --- single (state, action) pair, matching the PyTorch forward signature ---
    state = jax.random.normal(k_s, (state_size,), jnp.float32)
    action = jax.random.normal(k_a, (action_size,), jnp.float32)
    single = jax.jit(meta_predictor_forward)
    out = jax.block_until_ready(single(state, action, prepped))
    ref = reference_forward(state, action, params)
    assert out.shape == (1,)
    assert jnp.allclose(out, ref, atol=1e-5, rtol=1e-5), (out, ref)

    # --- batched: B samples through the M dimension of one kernel ---
    bsz = 16
    states = jax.random.normal(k_bs, (bsz, state_size), jnp.float32)
    actions = jax.random.normal(k_ba, (bsz, action_size), jnp.float32)
    batched = jax.jit(functools.partial(meta_predictor_forward_batched, tm=2048))
    out_b = jax.block_until_ready(batched(states, actions, prepped))
    ref_b = jax.vmap(lambda s, a: reference_forward(s, a, params))(states, actions)
    assert out_b.shape == (bsz, 1)
    assert jnp.allclose(out_b, ref_b, atol=1e-5, rtol=1e-5), (out_b, ref_b)

    # --- ragged batch (exercises the cdiv grid / masked last row tile) ---
    bsz2 = 21
    states2 = jax.random.normal(k_bs, (bsz2, state_size), jnp.float32)
    actions2 = jax.random.normal(k_ba, (bsz2, action_size), jnp.float32)
    out_b2 = jax.block_until_ready(batched(states2, actions2, prepped))
    ref_b2 = jax.vmap(lambda s, a: reference_forward(s, a, params))(states2, actions2)
    assert out_b2.shape == (bsz2, 1)
    assert jnp.allclose(out_b2, ref_b2, atol=1e-5, rtol=1e-5), (out_b2, ref_b2)

    print("KERNEL_OK")
</pallas_src>

<mosaic_0001>
module attributes {stable_mosaic.version = 11 : i64} {
  func.func @_mlp_kernel(%arg0: i32, %arg1: memref<8x8xf32, #tpu.memory_space<vmem>>, %arg2: memref<8x4xf32, #tpu.memory_space<vmem>>, %arg3: memref<12x128xf32, #tpu.memory_space<vmem>>, %arg4: memref<2x128x128xf32, #tpu.memory_space<vmem>>, %arg5: memref<3x1x128xf32, #tpu.memory_space<vmem>>, %arg6: memref<8x1xf32, #tpu.memory_space<vmem>>) attributes {dimension_semantics = [#tpu.dimension_semantics<parallel>], iteration_bounds = array<i64: 1>, scalar_prefetch = 0 : i64, scratch_operands = 0 : i64, tpu.core_type = #tpu.core_type<tc>, window_params = [{transform_indices = @transform_0, window_bounds = array<i64: 8, 8>}, {transform_indices = @transform_1, window_bounds = array<i64: 8, 4>}, {pipeline_mode = #tpu.pipeline_mode<synchronous>, transform_indices = @transform_2, window_bounds = array<i64: 12, 128>}, {pipeline_mode = #tpu.pipeline_mode<synchronous>, transform_indices = @transform_3, window_bounds = array<i64: 2, 128, 128>}, {pipeline_mode = #tpu.pipeline_mode<synchronous>, transform_indices = @transform_4, window_bounds = array<i64: 3, 1, 128>}, {transform_indices = @transform_5, window_bounds = array<i64: 8, 1>}]} {
    %c0 = arith.constant 0 : index
    %c0_0 = arith.constant 0 : index
    %0 = vector.load %arg1[%c0, %c0_0] : memref<8x8xf32, #tpu.memory_space<vmem>>, vector<8x8xf32>
    %c0_1 = arith.constant 0 : index
    %c0_2 = arith.constant 0 : index
    %1 = vector.load %arg2[%c0_1, %c0_2] : memref<8x4xf32, #tpu.memory_space<vmem>>, vector<8x4xf32>
    %cst = arith.constant 0.000000e+00 : f32
    %2 = vector.broadcast %cst : f32 to vector<8x128xf32>
    %c0_3 = arith.constant 0 : index
    %c0_4 = arith.constant 0 : index
    %c0_5 = arith.constant 0 : index
    %3 = vector.load %arg5[%c0_3, %c0_4, %c0_5] : memref<3x1x128xf32, #tpu.memory_space<vmem>>, vector<1x1x128xf32>
    %4 = vector.shape_cast %3 : vector<1x1x128xf32> to vector<1x128xf32>
    %5 = vector.broadcast %4 : vector<1x128xf32> to vector<8x128xf32>
    %6 = arith.addf %2, %5 : vector<8x128xf32>
    %7 = vector.extract_strided_slice %0 {offsets = [0, 0], sizes = [8, 1], strides = [1, 1]} : vector<8x8xf32> to vector<8x1xf32>
    %c0_6 = arith.constant 0 : index
    %c0_7 = arith.constant 0 : index
    %8 = vector.load %arg3[%c0_6, %c0_7] : memref<12x128xf32, #tpu.memory_space<vmem>>, vector<1x128xf32>
    %9 = vector.broadcast %7 : vector<8x1xf32> to vector<8x128xf32>
    %10 = vector.broadcast %8 : vector<1x128xf32> to vector<8x128xf32>
    %11 = arith.mulf %9, %10 : vector<8x128xf32>
    %12 = arith.addf %6, %11 : vector<8x128xf32>
    %13 = vector.extract_strided_slice %0 {offsets = [0, 1], sizes = [8, 1], strides = [1, 1]} : vector<8x8xf32> to vector<8x1xf32>
    %c1 = arith.constant 1 : index
    %c0_8 = arith.constant 0 : index
    %14 = vector.load %arg3[%c1, %c0_8] : memref<12x128xf32, #tpu.memory_space<vmem>>, vector<1x128xf32>
    %15 = vector.broadcast %13 : vector<8x1xf32> to vector<8x128xf32>
    %16 = vector.broadcast %14 : vector<1x128xf32> to vector<8x128xf32>
    %17 = arith.mulf %15, %16 : vector<8x128xf32>
    %18 = arith.addf %12, %17 : vector<8x128xf32>
    %19 = vector.extract_strided_slice %0 {offsets = [0, 2], sizes = [8, 1], strides = [1, 1]} : vector<8x8xf32> to vector<8x1xf32>
    %c2 = arith.constant 2 : index
    %c0_9 = arith.constant 0 : index
    %20 = vector.load %arg3[%c2, %c0_9] : memref<12x128xf32, #tpu.memory_space<vmem>>, vector<1x128xf32>
    %21 = vector.broadcast %19 : vector<8x1xf32> to vector<8x128xf32>
    %22 = vector.broadcast %20 : vector<1x128xf32> to vector<8x128xf32>
    %23 = arith.mulf %21, %22 : vector<8x128xf32>
    %24 = arith.addf %18, %23 : vector<8x128xf32>
    %25 = vector.extract_strided_slice %0 {offsets = [0, 3], sizes = [8, 1], strides = [1, 1]} : vector<8x8xf32> to vector<8x1xf32>
    %c3 = arith.constant 3 : index
    %c0_10 = arith.constant 0 : index
    %26 = vector.load %arg3[%c3, %c0_10] : memref<12x128xf32, #tpu.memory_space<vmem>>, vector<1x128xf32>
    %27 = vector.broadcast %25 : vector<8x1xf32> to vector<8x128xf32>
    %28 = vector.broadcast %26 : vector<1x128xf32> to vector<8x128xf32>
    %29 = arith.mulf %27, %28 : vector<8x128xf32>
    %30 = arith.addf %24, %29 : vector<8x128xf32>
    %31 = vector.extract_strided_slice %0 {offsets = [0, 4], sizes = [8, 1], strides = [1, 1]} : vector<8x8xf32> to vector<8x1xf32>
    %c4 = arith.constant 4 : index
    %c0_11 = arith.constant 0 : index
    %32 = vector.load %arg3[%c4, %c0_11] : memref<12x128xf32, #tpu.memory_space<vmem>>, vector<1x128xf32>
    %33 = vector.broadcast %31 : vector<8x1xf32> to vector<8x128xf32>
    %34 = vector.broadcast %32 : vector<1x128xf32> to vector<8x128xf32>
    %35 = arith.mulf %33, %34 : vector<8x128xf32>
    %36 = arith.addf %30, %35 : vector<8x128xf32>
    %37 = vector.extract_strided_slice %0 {offsets = [0, 5], sizes = [8, 1], strides = [1, 1]} : vector<8x8xf32> to vector<8x1xf32>
    %c5 = arith.constant 5 : index
    %c0_12 = arith.constant 0 : index
    %38 = vector.load %arg3[%c5, %c0_12] : memref<12x128xf32, #tpu.memory_space<vmem>>, vector<1x128xf32>
    %39 = vector.broadcast %37 : vector<8x1xf32> to vector<8x128xf32>
    %40 = vector.broadcast %38 : vector<1x128xf32> to vector<8x128xf32>
    %41 = arith.mulf %39, %40 : vector<8x128xf32>
    %42 = arith.addf %36, %41 : vector<8x128xf32>
    %43 = vector.extract_strided_slice %0 {offsets = [0, 6], sizes = [8, 1], strides = [1, 1]} : vector<8x8xf32> to vector<8x1xf32>
    %c6 = arith.constant 6 : index
    %c0_13 = arith.constant 0 : index
    %44 = vector.load %arg3[%c6, %c0_13] : memref<12x128xf32, #tpu.memory_space<vmem>>, vector<1x128xf32>
    %45 = vector.broadcast %43 : vector<8x1xf32> to vector<8x128xf32>
    %46 = vector.broadcast %44 : vector<1x128xf32> to vector<8x128xf32>
    %47 = arith.mulf %45, %46 : vector<8x128xf32>
    %48 = arith.addf %42, %47 : vector<8x128xf32>
    %49 = vector.extract_strided_slice %0 {offsets = [0, 7], sizes = [8, 1], strides = [1, 1]} : vector<8x8xf32> to vector<8x1xf32>
    %c7 = arith.constant 7 : index
    %c0_14 = arith.constant 0 : index
    %50 = vector.load %arg3[%c7, %c0_14] : memref<12x128xf32, #tpu.memory_space<vmem>>, vector<1x128xf32>
    %51 = vector.broadcast %49 : vector<8x1xf32> to vector<8x128xf32>
    %52 = vector.broadcast %50 : vector<1x128xf32> to vector<8x128xf32>
    %53 = arith.mulf %51, %52 : vector<8x128xf32>
    %54 = arith.addf %48, %53 : vector<8x128xf32>
    %55 = vector.extract_strided_slice %1 {offsets = [0, 0], sizes = [8, 1], strides = [1, 1]} : vector<8x4xf32> to vector<8x1xf32>
    %c8 = arith.constant 8 : index
    %c0_15 = arith.constant 0 : index
    %56 = vector.load %arg3[%c8, %c0_15] : memref<12x128xf32, #tpu.memory_space<vmem>>, vector<1x128xf32>
    %57 = vector.broadcast %55 : vector<8x1xf32> to vector<8x128xf32>
    %58 = vector.broadcast %56 : vector<1x128xf32> to vector<8x128xf32>
    %59 = arith.mulf %57, %58 : vector<8x128xf32>
    %60 = arith.addf %54, %59 : vector<8x128xf32>
    %61 = vector.extract_strided_slice %1 {offsets = [0, 1], sizes = [8, 1], strides = [1, 1]} : vector<8x4xf32> to vector<8x1xf32>
    %c9 = arith.constant 9 : index
    %c0_16 = arith.constant 0 : index
    %62 = vector.load %arg3[%c9, %c0_16] : memref<12x128xf32, #tpu.memory_space<vmem>>, vector<1x128xf32>
    %63 = vector.broadcast %61 : vector<8x1xf32> to vector<8x128xf32>
    %64 = vector.broadcast %62 : vector<1x128xf32> to vector<8x128xf32>
    %65 = arith.mulf %63, %64 : vector<8x128xf32>
    %66 = arith.addf %60, %65 : vector<8x128xf32>
    %67 = vector.extract_strided_slice %1 {offsets = [0, 2], sizes = [8, 1], strides = [1, 1]} : vector<8x4xf32> to vector<8x1xf32>
    %c10 = arith.constant 10 : index
    %c0_17 = arith.constant 0 : index
    %68 = vector.load %arg3[%c10, %c0_17] : memref<12x128xf32, #tpu.memory_space<vmem>>, vector<1x128xf32>
    %69 = vector.broadcast %67 : vector<8x1xf32> to vector<8x128xf32>
    %70 = vector.broadcast %68 : vector<1x128xf32> to vector<8x128xf32>
    %71 = arith.mulf %69, %70 : vector<8x128xf32>
    %72 = arith.addf %66, %71 : vector<8x128xf32>
    %73 = vector.extract_strided_slice %1 {offsets = [0, 3], sizes = [8, 1], strides = [1, 1]} : vector<8x4xf32> to vector<8x1xf32>
    %c11 = arith.constant 11 : index
    %c0_18 = arith.constant 0 : index
    %74 = vector.load %arg3[%c11, %c0_18] : memref<12x128xf32, #tpu.memory_space<vmem>>, vector<1x128xf32>
    %75 = vector.broadcast %73 : vector<8x1xf32> to vector<8x128xf32>
    %76 = vector.broadcast %74 : vector<1x128xf32> to vector<8x128xf32>
    %77 = arith.mulf %75, %76 : vector<8x128xf32>
    %78 = arith.addf %72, %77 : vector<8x128xf32>
    %cst_19 = arith.constant 0.000000e+00 : f32
    %79 = vector.broadcast %cst_19 : f32 to vector<8x128xf32>
    %80 = arith.maximumf %78, %79 : vector<8x128xf32>
    %c0_20 = arith.constant 0 : index
    %c0_21 = arith.constant 0 : index
    %c0_22 = arith.constant 0 : index
    %81 = vector.load %arg4[%c0_20, %c0_21, %c0_22] : memref<2x128x128xf32, #tpu.memory_space<vmem>>, vector<1x128x128xf32>
    %82 = vector.shape_cast %81 : vector<1x128x128xf32> to vector<128x128xf32>
    %cst_23 = arith.constant dense<0.000000e+00> : vector<8x128xf32>
    %83 = tpu.matmul %80, %82, %cst_23 {dimension_numbers = #tpu.dot_dimension_numbers<[1], [0], [0], [1], [0, 0, 1, 1], [], []>} : vector<8x128xf32>, vector<128x128xf32>, vector<8x128xf32> -> vector<8x128xf32>
    %c1_24 = arith.constant 1 : index
    %c0_25 = arith.constant 0 : index
    %c0_26 = arith.constant 0 : index
    %84 = vector.load %arg5[%c1_24, %c0_25, %c0_26] : memref<3x1x128xf32, #tpu.memory_space<vmem>>, vector<1x1x128xf32>
    %85 = vector.shape_cast %84 : vector<1x1x128xf32> to vector<1x128xf32>
    %86 = vector.broadcast %85 : vector<1x128xf32> to vector<8x128xf32>
    %87 = arith.addf %83, %86 : vector<8x128xf32>
    %cst_27 = arith.constant 0.000000e+00 : f32
    %88 = vector.broadcast %cst_27 : f32 to vector<8x128xf32>
    %89 = arith.maximumf %87, %88 : vector<8x128xf32>
    %c1_28 = arith.constant 1 : index
    %c0_29 = arith.constant 0 : index
    %c0_30 = arith.constant 0 : index
    %90 = vector.load %arg4[%c1_28, %c0_29, %c0_30] : memref<2x128x128xf32, #tpu.memory_space<vmem>>, vector<1x128x128xf32>
    %91 = vector.shape_cast %90 : vector<1x128x128xf32> to vector<128x128xf32>
    %cst_31 = arith.constant dense<0.000000e+00> : vector<8x128xf32>
    %92 = tpu.matmul %89, %91, %cst_31 {dimension_numbers = #tpu.dot_dimension_numbers<[1], [0], [0], [1], [0, 0, 1, 1], [], []>} : vector<8x128xf32>, vector<128x128xf32>, vector<8x128xf32> -> vector<8x128xf32>
    %c2_32 = arith.constant 2 : index
    %c0_33 = arith.constant 0 : index
    %c0_34 = arith.constant 0 : index
    %93 = vector.load %arg5[%c2_32, %c0_33, %c0_34] : memref<3x1x128xf32, #tpu.memory_space<vmem>>, vector<1x1x128xf32>
    %94 = vector.shape_cast %93 : vector<1x1x128xf32> to vector<1x128xf32>
    %95 = vector.broadcast %94 : vector<1x128xf32> to vector<8x128xf32>
    %96 = arith.addf %92, %95 : vector<8x128xf32>
    %97 = vector.extract_strided_slice %96 {offsets = [0, 0], sizes = [8, 1], strides = [1, 1]} : vector<8x128xf32> to vector<8x1xf32>
    %c0_35 = arith.constant 0 : index
    %c0_36 = arith.constant 0 : index
    %98 = vector.load %arg6[%c0_35, %c0_36] : memref<8x1xf32, #tpu.memory_space<vmem>>, vector<8x1xf32>
    tpu.vector_store %arg6[%c0_35, %c0_36], %97 {strides = array<i32>} : memref<8x1xf32, #tpu.memory_space<vmem>>, vector<8x1xf32>,
    return
  }
  func.func @transform_0(%arg0: i32) -> (i32, i32) {
    %c0_i32 = arith.constant 0 : i32
    %c0_i32_0 = arith.constant 0 : i32
    return %arg0, %c0_i32 : i32, i32
  }
  func.func @transform_1(%arg0: i32) -> (i32, i32) {
    %c0_i32 = arith.constant 0 : i32
    %c0_i32_0 = arith.constant 0 : i32
    return %arg0, %c0_i32 : i32, i32
  }
  func.func @transform_2(%arg0: i32) -> (i32, i32) {
    %c0_i32 = arith.constant 0 : i32
    %c0_i32_0 = arith.constant 0 : i32
    %c0_i32_1 = arith.constant 0 : i32
    return %c0_i32, %c0_i32_0 : i32, i32
  }
  func.func @transform_3(%arg0: i32) -> (i32, i32, i32) {
    %c0_i32 = arith.constant 0 : i32
    %c0_i32_0 = arith.constant 0 : i32
    %c0_i32_1 = arith.constant 0 : i32
    %c0_i32_2 = arith.constant 0 : i32
    return %c0_i32, %c0_i32_0, %c0_i32_1 : i32, i32, i32
  }
  func.func @transform_4(%arg0: i32) -> (i32, i32, i32) {
    %c0_i32 = arith.constant 0 : i32
    %c0_i32_0 = arith.constant 0 : i32
    %c0_i32_1 = arith.constant 0 : i32
    %c0_i32_2 = arith.constant 0 : i32
    return %c0_i32, %c0_i32_0, %c0_i32_1 : i32, i32, i32
  }
  func.func @transform_5(%arg0: i32) -> (i32, i32) {
    %c0_i32 = arith.constant 0 : i32
    %c0_i32_0 = arith.constant 0 : i32
    return %arg0, %c0_i32 : i32, i32
  }
}

</mosaic_0001>

<llo_original>
// kernel: meta_predictor_forward.1
$region0: #{meta_predictor_forward.1}
  #allocation0 [shape = 'u32[]', space=smem, size = 0x4, offset = 0x4, fixed_abs, tag = 'smem constant byte address 0x4 - core index']
  #allocation1 [shape = 'u32[144,128]{1,0:T(1,128)}', space=vmem, size = 0x12000, scoped, tag = 'internal scratch']
  %s0 = inlined_call_operand.vmem [shape: f32[1,8], index: 0, kind: input, shape index: {}]
  %s1 = inlined_call_operand.vmem [shape: f32[1,4], index: 1, kind: input, shape index: {}]
  %s2 = inlined_call_operand.hbm [shape: f32[12,128], index: 2, kind: input, shape index: {}]
  %s3 = inlined_call_operand.hbm [shape: f32[2,128,128], index: 3, kind: input, shape index: {}]
  %s4 = inlined_call_operand.vmem [shape: f32[3,1,128], index: 4, kind: input, shape index: {}]
  %s5 = inlined_call_operand.hbm [shape: f32[1,1], index: 5, kind: output, shape index: {}]
  %s6 = sld [smem:[#allocation0]]
  $region38: #{meta_predictor_forward.1} parent=0
    _
  %s8 = ssub.s32 1, %s6
  %s9 = scalar_select 0, %s8, %s6
  $region1: #{meta_predictor_forward.1} parent=0
    #allocation2 [shape = 'u8[8192]{0}', space=vmem, size = 0x2000, scoped, tag = 'input window, operand 2, single buffered']
    #allocation3 [shape = 's32[1]{0}', space=sflag, size = 0x4, scoped, tag = 'scoped memory for meta_predictor_forward.1']
    #allocation4 [shape = 's32[1]{0}', space=sflag, size = 0x4, scoped, tag = 'scoped memory for meta_predictor_forward.1']
    #allocation5 [shape = 'u8[131072]{0}', space=vmem, size = 0x20000, scoped, tag = 'input window, operand 3, single buffered']
    #allocation6 [shape = 's32[1]{0}', space=sflag, size = 0x4, scoped, tag = 'scoped memory for meta_predictor_forward.1']
    #allocation7 [shape = 'u8[4096]{0}', space=vmem, size = 0x1000, scoped, tag = 'output window, operand 0, single buffered']
    %10 = vsyncpa [#allocation3], 0
    %11 = vsyncpa [#allocation6], 0
    %12 = vsyncpa [#allocation4], 0
    // Predicated region
    $region2: #{meta_predictor_forward.1} parent=1 // pred_check
      _
    $region3: #{meta_predictor_forward.1} parent=1 // pred_check_branch
      %14 = sbr.rel (0) target = $region5
    $region4: #{meta_predictor_forward.1} parent=1 // pred_region
      _
    $region5: #{meta_predictor_forward.1} parent=1 // pred_fallthru
      _
    // Predicated region
    $region6: #{meta_predictor_forward.1} parent=1 // pred_check
      _
    $region7: #{meta_predictor_forward.1} parent=1 // pred_check_branch
      %16 = sbr.rel (0) target = $region9
    $region8: #{meta_predictor_forward.1} parent=1 // pred_region
      _
    $region9: #{meta_predictor_forward.1} parent=1 // pred_fallthru
      _
    // Predicated region
    $region10: #{meta_predictor_forward.1} parent=1 // pred_check
      _
    $region11: #{meta_predictor_forward.1} parent=1 // pred_check_branch
      %18 = sbr.rel (0) target = $region13
    $region12: #{meta_predictor_forward.1} parent=1 // pred_region
      %s20 = ssub.s32 256, 256
      %21 = vsyncadd [#allocation3], %s20
      %s22 = sshll.u32 [#allocation2], 4
      %s23 = int_to_ptr.vmem [resolvable:$true] %s22
      %28 = dma.hbm_to_vmem [thread:$0]  %s2, 256, %s23, [#allocation3], 128, 128, 8
    $region13: #{meta_predictor_forward.1} parent=1 // pred_fallthru
      _
    // Predicated region
    $region14: #{meta_predictor_forward.1} parent=1 // pred_check
      _
    $region15: #{meta_predictor_forward.1} parent=1 // pred_check_branch
      %30 = sbr.rel (0) target = $region17
    $region16: #{meta_predictor_forward.1} parent=1 // pred_region
      %s32 = ssub.s32 4096, 4096
      %33 = vsyncadd [#allocation6], %s32
      %s34 = sshll.u32 [#allocation5], 4
      %s35 = int_to_ptr.vmem [resolvable:$true] %s34
      %40 = dma.hbm_to_vmem [thread:$0]  %s3, 4096, %s35, [#allocation6], 128, 128, 8
    $region17: #{meta_predictor_forward.1} parent=1 // pred_fallthru
      _
    // Predicated region
    $region18: #{meta_predictor_forward.1} parent=1 // pred_check
      _
    $region19: #{meta_predictor_forward.1} parent=1 // pred_check_branch
      %42 = sbr.rel (0) target = $region21
    $region20: #{meta_predictor_forward.1} parent=1 // pred_region
      _
    $region21: #{meta_predictor_forward.1} parent=1 // pred_fallthru
      _
    // Predicated region
    $region22: #{meta_predictor_forward.1} parent=1 // pred_check
      _
    $region23: #{meta_predictor_forward.1} parent=1 // pred_check_branch
      %44 = sbr.rel (0) target = $region25
    $region24: #{meta_predictor_forward.1} parent=1 // pred_region
      %45 = dma.done [#allocation3], 256
    $region25: #{meta_predictor_forward.1} parent=1 // pred_fallthru
      _
    // Predicated region
    $region26: #{meta_predictor_forward.1} parent=1 // pred_check
      _
    $region27: #{meta_predictor_forward.1} parent=1 // pred_check_branch
      %47 = sbr.rel (0) target = $region29
    $region28: #{meta_predictor_forward.1} parent=1 // pred_region
      %48 = dma.done [#allocation6], 4096
    $region29: #{meta_predictor_forward.1} parent=1 // pred_fallthru
      _
    %v49 = vld [vmem:[%s0] sm:$0xff]
    %v50 = vld [vmem:[%s1] sm:$0xff]
    %v51 = vld [vmem:[%s4] sm:$0x1]
    %v53 = vlaneseq
    %v54 = vshrl.u32 %v53, 7
    %v55 = vsub.s32 0, %v54
    %v56 = vrot.slane %v51, %v55
    %v58 = vadd.f32 %v56, 0.0
    %v59 = vld [vmem:[#allocation2] sm:$0x1]
    %61 = vset.pattern.permute.xlu0 0
    %62 = vperm.xlu0 %61, %v49
    %v63 = vpop.permute.xlu0 %62
    %v65 = vlaneseq
    %v66 = vshrl.u32 %v65, 7
    %v67 = vsub.s32 0, %v66
    %v68 = vrot.slane %v59, %v67
    %v69 = vmul.f32 %v63, %v68
    %v70 = vadd.f32 %v58, %v69
    %v71 = vld [vmem:[#allocation2 + $0x1] sm:$0x1]
    %72 = vset.pattern.permute.xlu0 1
    %73 = vperm.xlu0 %72, %v49
    %v74 = vpop.permute.xlu0 %73
    %v76 = vlaneseq
    %v77 = vshrl.u32 %v76, 7
    %v78 = vsub.s32 0, %v77
    %v79 = vrot.slane %v71, %v78
    %v80 = vmul.f32 %v74, %v79
    %v81 = vadd.f32 %v70, %v80
    %v82 = vld [vmem:[#allocation2 + $0x2] sm:$0x1]
    %83 = vset.pattern.permute.xlu0 2
    %84 = vperm.xlu0 %83, %v49
    %v85 = vpop.permute.xlu0 %84
    %v87 = vlaneseq
    %v88 = vshrl.u32 %v87, 7
    %v89 = vsub.s32 0, %v88
    %v90 = vrot.slane %v82, %v89
    %v91 = vmul.f32 %v85, %v90
    %v92 = vadd.f32 %v81, %v91
    %v93 = vld [vmem:[#allocation2 + $0x3] sm:$0x1]
    %94 = vset.pattern.permute.xlu0 3
    %95 = vperm.xlu0 %94, %v49
    %v96 = vpop.permute.xlu0 %95
    %v98 = vlaneseq
    %v99 = vshrl.u32 %v98, 7
    %v100 = vsub.s32 0, %v99
    %v101 = vrot.slane %v93, %v100
    %v102 = vmul.f32 %v96, %v101
    %v103 = vadd.f32 %v92, %v102
    %v104 = vld [vmem:[#allocation2 + $0x4] sm:$0x1]
    %105 = vset.pattern.permute.xlu0 4
    %106 = vperm.xlu0 %105, %v49
    %v107 = vpop.permute.xlu0 %106
    %v109 = vlaneseq
    %v110 = vshrl.u32 %v109, 7
    %v111 = vsub.s32 0, %v110
    %v112 = vrot.slane %v104, %v111
    %v113 = vmul.f32 %v107, %v112
    %v114 = vadd.f32 %v103, %v113
    %v115 = vld [vmem:[#allocation2 + $0x5] sm:$0x1]
    %116 = vset.pattern.permute.xlu0 5
    %117 = vperm.xlu0 %116, %v49
    %v118 = vpop.permute.xlu0 %117
    %v120 = vlaneseq
    %v121 = vshrl.u32 %v120, 7
    %v122 = vsub.s32 0, %v121
    %v123 = vrot.slane %v115, %v122
    %v124 = vmul.f32 %v118, %v123
    %v125 = vadd.f32 %v114, %v124
    %v126 = vld [vmem:[#allocation2 + $0x6] sm:$0x1]
    %127 = vset.pattern.permute.xlu0 6
    %128 = vperm.xlu0 %127, %v49
    %v129 = vpop.permute.xlu0 %128
    %v131 = vlaneseq
    %v132 = vshrl.u32 %v131, 7
    %v133 = vsub.s32 0, %v132
    %v134 = vrot.slane %v126, %v133
    %v135 = vmul.f32 %v129, %v134
    %v136 = vadd.f32 %v125, %v135
    %v137 = vld [vmem:[#allocation2 + $0x7] sm:$0x1]
    %138 = vset.pattern.permute.xlu0 7
    %139 = vperm.xlu0 %138, %v49
    %v140 = vpop.permute.xlu0 %139
    %v142 = vlaneseq
    %v143 = vshrl.u32 %v142, 7
    %v144 = vsub.s32 0, %v143
    %v145 = vrot.slane %v137, %v144
    %v146 = vmul.f32 %v140, %v145
    %v147 = vadd.f32 %v136, %v146
    %v148 = vld [vmem:[#allocation2 + $0x8] sm:$0x1]
    %150 = vset.pattern.permute.xlu0 0
    %151 = vperm.xlu0 %150, %v50
    %v152 = vpop.permute.xlu0 %151
    %v154 = vlaneseq
    %v155 = vshrl.u32 %v154, 7
    %v156 = vsub.s32 0, %v155
    %v157 = vrot.slane %v148, %v156
    %v158 = vmul.f32 %v152, %v157
    %v159 = vadd.f32 %v147, %v158
    %v160 = vld [vmem:[#allocation2 + $0x9] sm:$0x1]
    %161 = vset.pattern.permute.xlu0 1
    %162 = vperm.xlu0 %161, %v50
    %v163 = vpop.permute.xlu0 %162
    %v165 = vlaneseq
    %v166 = vshrl.u32 %v165, 7
    %v167 = vsub.s32 0, %v166
    %v168 = vrot.slane %v160, %v167
    %v169 = vmul.f32 %v163, %v168
    %v170 = vadd.f32 %v159, %v169
    %v171 = vld [vmem:[#allocation2 + $0xa] sm:$0x1]
    %172 = vset.pattern.permute.xlu0 2
    %173 = vperm.xlu0 %172, %v50
    %v174 = vpop.permute.xlu0 %173
    %v176 = vlaneseq
    %v177 = vshrl.u32 %v176, 7
    %v178 = vsub.s32 0, %v177
    %v179 = vrot.slane %v171, %v178
    %v180 = vmul.f32 %v174, %v179
    %v181 = vadd.f32 %v170, %v180
    %v182 = vld [vmem:[#allocation2 + $0xb] sm:$0x1]
    %183 = vset.pattern.permute.xlu0 3
    %184 = vperm.xlu0 %183, %v50
    %v185 = vpop.permute.xlu0 %184
    %v187 = vlaneseq
    %v188 = vshrl.u32 %v187, 7
    %v189 = vsub.s32 0, %v188
    %v190 = vrot.slane %v182, %v189
    %v191 = vmul.f32 %v185, %v190
    %v192 = vadd.f32 %v181, %v191
    %v193 = vmax.f32 %v192, 0.0
    %v194 = vld [vmem:[#allocation5] sm:$0xff]
    %v195 = vld [vmem:[#allocation5 + $0x8] sm:$0xff]
    %v196 = vld [vmem:[#allocation5 + $0x10] sm:$0xff]
    %v197 = vld [vmem:[#allocation5 + $0x18] sm:$0xff]
    %v198 = vld [vmem:[#allocation5 + $0x20] sm:$0xff]
    %v199 = vld [vmem:[#allocation5 + $0x28] sm:$0xff]
    %v200 = vld [vmem:[#allocation5 + $0x30] sm:$0xff]
    %v201 = vld [vmem:[#allocation5 + $0x38] sm:$0xff]
    %v202 = vld [vmem:[#allocation5 + $0x40] sm:$0xff]
    %v203 = vld [vmem:[#allocation5 + $0x48] sm:$0xff]
    %v204 = vld [vmem:[#allocation5 + $0x50] sm:$0xff]
    %v205 = vld [vmem:[#allocation5 + $0x58] sm:$0xff]
    %v206 = vld [vmem:[#allocation5 + $0x60] sm:$0xff]
    %v207 = vld [vmem:[#allocation5 + $0x68] sm:$0xff]
    %v208 = vld [vmem:[#allocation5 + $0x70] sm:$0xff]
    %v209 = vld [vmem:[#allocation5 + $0x78] sm:$0xff]
    %s210 = scalar_lea.vmem %s4, 1
    %v211 = vld [vmem:[%s210] sm:$0x1]
    %v213 = vlaneseq
    %v214 = vshrl.u32 %v213, 7
    %v215 = vsub.s32 0, %v214
    %v216 = vrot.slane %v211, %v215
    %218 = vmatprep.subr.mxu0 0.0
    %219 = vmatpush1.msra.mxu0 %v194
    %220 = vmatprep.subr.mxu0 0.0
    %221 = vmatpush1.msra.mxu0 %v195
    %222 = vmatprep.subr.mxu0 0.0
    %223 = vmatpush1.msra.mxu0 %v196
    %224 = vmatprep.subr.mxu0 0.0
    %225 = vmatpush1.msra.mxu0 %v197
    %226 = vmatprep.subr.mxu0 0.0
    %227 = vmatpush1.msra.mxu0 %v198
    %228 = vmatprep.subr.mxu0 0.0
    %229 = vmatpush1.msra.mxu0 %v199
    %230 = vmatprep.subr.mxu0 0.0
    %231 = vmatpush1.msra.mxu0 %v200
    %232 = vmatprep.subr.mxu0 0.0
    %233 = vmatpush1.msra.mxu0 %v201
    %234 = vmatprep.subr.mxu0 0.0
    %235 = vmatpush1.msra.mxu0 %v202
    %236 = vmatprep.subr.mxu0 0.0
    %237 = vmatpush1.msra.mxu0 %v203
    %238 = vmatprep.subr.mxu0 0.0
    %239 = vmatpush1.msra.mxu0 %v204
    %240 = vmatprep.subr.mxu0 0.0
    %241 = vmatpush1.msra.mxu0 %v205
    %242 = vmatprep.subr.mxu0 0.0
    %243 = vmatpush1.msra.mxu0 %v206
    %244 = vmatprep.subr.mxu0 0.0
    %245 = vmatpush1.msra.mxu0 %v207
    %246 = vmatprep.subr.mxu0 0.0
    %247 = vmatpush1.msra.mxu0 %v208
    %248 = vmatprep.subr.mxu0 0.0
    %249 = vmatpush1.msra.mxu0 %v209
    %250 = vmatprep.subr.mxu0 0.0
    %251 = vmatpush1.msra.mxu0 0.0
    %252 = vmatprep.subr.mxu0 0.0
    %253 = vmatpush1.msra.mxu0 0.0
    %254 = vmatprep.subr.mxu0 0.0
    %255 = vmatpush1.msra.mxu0 0.0
    %256 = vmatprep.subr.mxu0 0.0
    %257 = vmatpush1.msra.mxu0 0.0
    %258 = vmatprep.subr.mxu0 0.0
    %259 = vmatpush1.msra.mxu0 0.0
    %260 = vmatprep.subr.mxu0 0.0
    %261 = vmatpush1.msra.mxu0 0.0
    %262 = vmatprep.subr.mxu0 0.0
    %263 = vmatpush1.msra.mxu0 0.0
    %264 = vmatprep.subr.mxu0 0.0
    %265 = vmatpush1.msra.mxu0 0.0
    %266 = vmatprep.subr.mxu0 0.0
    %267 = vmatpush1.msra.mxu0 0.0
    %268 = vmatprep.subr.mxu0 0.0
    %269 = vmatpush1.msra.mxu0 0.0
    %270 = vmatprep.subr.mxu0 0.0
    %271 = vmatpush1.msra.mxu0 0.0
    %272 = vmatprep.subr.mxu0 0.0
    %273 = vmatpush1.msra.mxu0 0.0
    %274 = vmatprep.subr.mxu0 0.0
    %275 = vmatpush1.msra.mxu0 0.0
    %276 = vmatprep.subr.mxu0 0.0
    %277 = vmatpush1.msra.mxu0 0.0
    %278 = vmatprep.subr.mxu0 0.0
    %279 = vmatpush1.msra.mxu0 0.0
    %280 = vmatprep.subr.mxu0 0.0
    %281 = vmatpush1.msra.mxu0 0.0
    %282 = vmatprep.mubr.f32.mxu0 0.0
    %283 = vmatmul.mubr.f32.gmra.mrb[0].mxu0 %v193
    %v284 = vpop.f32.mrb[0].mxu0
    %v285 = vadd.f32 %v216, %v284
    %v286 = vpop.f32.mrb[0].mxu0
    %287 = vdwg.mxu0
    %v288 = vmax.f32 %v285, 0.0
    %s289 = scalar_lea.vmem [#allocation5], 128
    %v290 = vld [vmem:[%s289] sm:$0xff]
    %v291 = vld [vmem:[%s289 + $0x8] sm:$0xff]
    %v292 = vld [vmem:[%s289 + $0x10] sm:$0xff]
    %v293 = vld [vmem:[%s289 + $0x18] sm:$0xff]
    %v294 = vld [vmem:[%s289 + $0x20] sm:$0xff]
    %v295 = vld [vmem:[%s289 + $0x28] sm:$0xff]
    %v296 = vld [vmem:[%s289 + $0x30] sm:$0xff]
    %v297 = vld [vmem:[%s289 + $0x38] sm:$0xff]
    %v298 = vld [vmem:[%s289 + $0x40] sm:$0xff]
    %v299 = vld [vmem:[%s289 + $0x48] sm:$0xff]
    %v300 = vld [vmem:[%s289 + $0x50] sm:$0xff]
    %v301 = vld [vmem:[%s289 + $0x58] sm:$0xff]
    %v302 = vld [vmem:[%s289 + $0x60] sm:$0xff]
    %v303 = vld [vmem:[%s289 + $0x68] sm:$0xff]
    %v304 = vld [vmem:[%s289 + $0x70] sm:$0xff]
    %v305 = vld [vmem:[%s289 + $0x78] sm:$0xff]
    %s306 = scalar_lea.vmem %s4, 2
    %v307 = vld [vmem:[%s306] sm:$0x1]
    %v309 = vlaneseq
    %v310 = vshrl.u32 %v309, 7
    %v311 = vsub.s32 0, %v310
    %v312 = vrot.slane %v307, %v311
    %314 = vmatprep.subr.mxu0 0.0
    %315 = vmatpush1.msra.mxu0 %v290
    %316 = vmatprep.subr.mxu0 0.0
    %317 = vmatpush1.msra.mxu0 %v291
    %318 = vmatprep.subr.mxu0 0.0
    %319 = vmatpush1.msra.mxu0 %v292
    %320 = vmatprep.subr.mxu0 0.0
    %321 = vmatpush1.msra.mxu0 %v293
    %322 = vmatprep.subr.mxu0 0.0
    %323 = vmatpush1.msra.mxu0 %v294
    %324 = vmatprep.subr.mxu0 0.0
    %325 = vmatpush1.msra.mxu0 %v295
    %326 = vmatprep.subr.mxu0 0.0
    %327 = vmatpush1.msra.mxu0 %v296
    %328 = vmatprep.subr.mxu0 0.0
    %329 = vmatpush1.msra.mxu0 %v297
    %330 = vmatprep.subr.mxu0 0.0
    %331 = vmatpush1.msra.mxu0 %v298
    %332 = vmatprep.subr.mxu0 0.0
    %333 = vmatpush1.msra.mxu0 %v299
    %334 = vmatprep.subr.mxu0 0.0
    %335 = vmatpush1.msra.mxu0 %v300
    %336 = vmatprep.subr.mxu0 0.0
    %337 = vmatpush1.msra.mxu0 %v301
    %338 = vmatprep.subr.mxu0 0.0
    %339 = vmatpush1.msra.mxu0 %v302
    %340 = vmatprep.subr.mxu0 0.0
    %341 = vmatpush1.msra.mxu0 %v303
    %342 = vmatprep.subr.mxu0 0.0
    %343 = vmatpush1.msra.mxu0 %v304
    %344 = vmatprep.subr.mxu0 0.0
    %345 = vmatpush1.msra.mxu0 %v305
    %346 = vmatprep.subr.mxu0 0.0
    %347 = vmatpush1.msra.mxu0 0.0
    %348 = vmatprep.subr.mxu0 0.0
    %349 = vmatpush1.msra.mxu0 0.0
    %350 = vmatprep.subr.mxu0 0.0
    %351 = vmatpush1.msra.mxu0 0.0
    %352 = vmatprep.subr.mxu0 0.0
    %353 = vmatpush1.msra.mxu0 0.0
    %354 = vmatprep.subr.mxu0 0.0
    %355 = vmatpush1.msra.mxu0 0.0
    %356 = vmatprep.subr.mxu0 0.0
    %357 = vmatpush1.msra.mxu0 0.0
    %358 = vmatprep.subr.mxu0 0.0
    %359 = vmatpush1.msra.mxu0 0.0
    %360 = vmatprep.subr.mxu0 0.0
    %361 = vmatpush1.msra.mxu0 0.0
    %362 = vmatprep.subr.mxu0 0.0
    %363 = vmatpush1.msra.mxu0 0.0
    %364 = vmatprep.subr.mxu0 0.0
    %365 = vmatpush1.msra.mxu0 0.0
    %366 = vmatprep.subr.mxu0 0.0
    %367 = vmatpush1.msra.mxu0 0.0
    %368 = vmatprep.subr.mxu0 0.0
    %369 = vmatpush1.msra.mxu0 0.0
    %370 = vmatprep.subr.mxu0 0.0
    %371 = vmatpush1.msra.mxu0 0.0
    %372 = vmatprep.subr.mxu0 0.0
    %373 = vmatpush1.msra.mxu0 0.0
    %374 = vmatprep.subr.mxu0 0.0
    %375 = vmatpush1.msra.mxu0 0.0
    %376 = vmatprep.subr.mxu0 0.0
    %377 = vmatpush1.msra.mxu0 0.0
    %378 = vmatprep.mubr.f32.mxu0 0.0
    %379 = vmatmul.mubr.f32.gmra.mrb[0].mxu0 %v288
    %v380 = vpop.f32.mrb[0].mxu0
    %v381 = vadd.f32 %v312, %v380
    %v382 = vpop.f32.mrb[0].mxu0
    %383 = vdwg.mxu0
    %vm384 = vcmask 7168
    %385 = vst.msk [vmem:[#allocation7] sm:$0xff] %vm384, %v381
    // Predicated region
    $region30: #{meta_predictor_forward.1} parent=1 // pred_check
      _
    $region31: #{meta_predictor_forward.1} parent=1 // pred_check_branch
      %387 = sbr.rel (0) target = $region33
    $region32: #{meta_predictor_forward.1} parent=1 // pred_region
      %s389 = ssub.s32 128, 16
      %390 = vsyncadd [#allocation4], %s389
      %s391 = sshll.u32 [#allocation7], 4
      %s392 = int_to_ptr.vmem [resolvable:$true] %s391
      %397 = dma.vmem_to_hbm [thread:$0]  %s392, 16, %s5, [#allocation4], 16, 16, 1
    $region33: #{meta_predictor_forward.1} parent=1 // pred_fallthru
      _
    // Predicated region
    $region34: #{meta_predictor_forward.1} parent=1 // pred_check
      _
    $region35: #{meta_predictor_forward.1} parent=1 // pred_check_branch
      %399 = sbr.rel (0) target = $region37
    $region36: #{meta_predictor_forward.1} parent=1 // pred_region
      %400 = dma.done [#allocation4], 128
    $region37: #{meta_predictor_forward.1} parent=1 // pred_fallthru
      _
    %401 = vsyncpa [#allocation3], 1
    %402 = vsyncpa [#allocation6], 1
    %403 = vsyncpa [#allocation4], 1

</llo_original>
